<compile_context>
chip_gen: v7x
topology: tpu7x:2x2x1
jax: 0.10.0
libtpu: 0.0.40
codegen_flags: <defaults>
</compile_context>

<pallas_src>
import jax
import jax.numpy as jnp
from jax.experimental import pallas as pl
from jax.experimental.pallas import tpu as pltpu


def _round_up(x, m):
    return (x + m - 1) // m * m


def _xavier_uniform(key, shape):
    # torch.nn.init.xavier_uniform_ for a 2-D tensor: (fan_out, fan_in) = shape
    fan_out, fan_in = shape
    limit = (6.0 / (fan_in + fan_out)) ** 0.5
    return jax.random.uniform(key, shape, jnp.float32, -limit, limit)


def _pick_block_n(n, requested):
    """Choose the N tile size.

    Small N -> single tile (block == full array satisfies the (8,128) layout rule
    for any N).  Larger N -> (8,128)-aligned tiles, capped so the grid has at
    least 2 tiles (keeps both v7x TensorCores busy on the "parallel" grid axis).
    """
    if n <= 256:
        return n
    bn = min(int(requested), _round_up(pl.cdiv(n, 2), 128))
    return max(128, (bn // 128) * 128)


def _projector_kernel(x_ref, idx_ref, b_ref, wT_ref, emb_ref, out_ref):
    # x_ref   : [bn, D_IN]      compute dtype   dense feature tile
    # idx_ref : [bn, 1]         int32           embedding index tile
    # b_ref   : [1, H_PAD]      f32             resident; bias placed in lanes [0, H_FEAT)
    # wT_ref  : [D_IN, H_PAD]   compute dtype   resident; W.T placed in lanes [0, H_FEAT)
    # emb_ref : [V_PAD, H_PAD]  compute dtype   resident; table placed in lanes [H_FEAT, H_OUT)
    # out_ref : [bn, H_PAD]     out dtype       lane-dense, already-concatenated tile
    bn = x_ref.shape[0]
    v_pad = emb_ref.shape[0]

    # Linear projection -> lanes [0, H_FEAT).  f32 accumulation on the MXU.
    acc = jnp.dot(x_ref[...], wT_ref[...], preferred_element_type=jnp.float32)

    # Embedding lookup as a one-hot MXU gather -> lanes [H_FEAT, H_OUT).
    # iota/compare stay integer; cast to the compute dtype only at the dot input.
    one_hot = jax.lax.broadcasted_iota(jnp.int32, (bn, v_pad), 1) == idx_ref[...]
    acc = acc + jnp.dot(one_hot.astype(emb_ref.dtype), emb_ref[...],
                        preferred_element_type=jnp.float32)

    # f32 bias add, then a single dense (unmasked) store of the padded tile.
    out_ref[...] = (acc + b_ref[...]).astype(out_ref.dtype)


def linear_projector(x_feat, lin_w, lin_b, emb_tbl, ids, *,
                     block_n=1024, compute_dtype=jnp.bfloat16,
                     out_dtype=jnp.float32):
    """Fused LinearProjector.forward for {dense float feature, int id feature}."""
    n, d_in = x_feat.shape
    h_feat = lin_w.shape[0]
    v, h_id = emb_tbl.shape
    h_out = h_feat + h_id
    h_pad = _round_up(h_out, 128)      # lane-dense output width
    v_pad = _round_up(v, 16)           # clean bf16 sublane packing for the one-hot dot

    # ---- init-time parameter prep (would be cached once in a real model) -----
    wT = jnp.zeros((d_in, h_pad), compute_dtype).at[:, :h_feat].set(
        lin_w.T.astype(compute_dtype))
    emb = jnp.zeros((v_pad, h_pad), compute_dtype).at[:v, h_feat:h_out].set(
        emb_tbl.astype(compute_dtype))
    bias = jnp.zeros((1, h_pad), jnp.float32).at[0, :h_feat].set(
        lin_b.astype(jnp.float32))

    # ---- per-call inputs: no jnp.pad over N (ragged last tile handled by Pallas)
    x = x_feat.astype(compute_dtype)
    idx = ids.astype(jnp.int32).reshape(n, 1)

    bn = _pick_block_n(n, block_n)
    grid = (pl.cdiv(n, bn),)

    in_itemsize = jnp.dtype(compute_dtype).itemsize
    out_itemsize = jnp.dtype(out_dtype).itemsize
    bytes_accessed = (n * d_in * in_itemsize                 # x
                      + n * 4                                # idx
                      + (d_in + v_pad) * h_pad * in_itemsize # resident weights
                      + h_pad * 4                            # bias
                      + n * h_pad * out_itemsize)            # out
    flops = 2 * n * (d_in + v_pad) * h_pad

    out = pl.pallas_call(
        _projector_kernel,
        out_shape=jax.ShapeDtypeStruct((n, h_pad), out_dtype),
        grid=grid,
        in_specs=[
            pl.BlockSpec((bn, d_in), lambda i: (i, 0)),     # x tile
            pl.BlockSpec((bn, 1), lambda i: (i, 0)),        # idx tile
            pl.BlockSpec((1, h_pad), lambda i: (0, 0)),     # bias (resident)
            pl.BlockSpec((d_in, h_pad), lambda i: (0, 0)),  # W.T, lane-placed (resident)
            pl.BlockSpec((v_pad, h_pad), lambda i: (0, 0)), # emb table, lane-placed (resident)
        ],
        out_specs=pl.BlockSpec((bn, h_pad), lambda i: (i, 0)),
        compiler_params=pltpu.CompilerParams(
            dimension_semantics=("parallel",),   # shard N tiles across TCs (v7x)
            vmem_limit_bytes=32 * 1024 * 1024,   # explicit (v5e default is 16 MiB)
        ),
        cost_estimate=pl.CostEstimate(
            flops=flops, transcendentals=0, bytes_accessed=bytes_accessed),
    )(x, idx, bias, wT, emb)

    # Callers with H_OUT % 128 == 0 (or that consume the padded layout) skip this.
    return out if h_out == h_pad else out[:, :h_out]


if __name__ == "__main__":
    # Small synthetic setup consistent with the module.
    N, D_IN = 8, 16          # dense node feature: float32 [N, D_IN]
    H_FEAT, H_ID = 32, 32    # hidden_dims_dict = {"feat": 32, "id": 32}
    MAX_ID = 10
    V = MAX_ID + 2           # nn.Embedding(data.max() + 2, H_ID, padding_idx=-1)

    key = jax.random.PRNGKey(0)
    k_x, k_id, k_w, k_e = jax.random.split(key, 4)

    x_feat = jax.random.normal(k_x, (N, D_IN), jnp.float32)
    ids = jax.random.randint(k_id, (N,), 0, MAX_ID + 1, jnp.int32)

    # Deterministic parameter init matching the module's __init__.
    lin_w = _xavier_uniform(k_w, (H_FEAT, D_IN))      # nn.Linear weight
    lin_b = jnp.zeros((H_FEAT,), jnp.float32)         # nn.init.constant_(bias, 0)
    emb_tbl = _xavier_uniform(k_e, (V, H_ID))         # nn.Embedding weight (xavier)

    out = linear_projector(x_feat, lin_w, lin_b, emb_tbl, ids)
    out = jax.block_until_ready(out)

    # Pure-JAX reference with matching bf16 input rounding (f32 accumulation),
    # mirroring the kernel's compute_dtype=bfloat16 default.
    xb = x_feat.astype(jnp.bfloat16).astype(jnp.float32)
    wb = lin_w.astype(jnp.bfloat16).astype(jnp.float32)
    eb = emb_tbl.astype(jnp.bfloat16).astype(jnp.float32)
    ref = jnp.concatenate([xb @ wb.T + lin_b, eb[ids]], axis=-1)

    assert out.shape == (N, H_FEAT + H_ID)
    assert out.dtype == jnp.float32
    assert jnp.allclose(out, ref, atol=1e-2, rtol=1e-2)

    print("KERNEL_OK")
</pallas_src>

<mosaic_0001>
module attributes {stable_mosaic.version = 11 : i64} {
  func.func @_projector_kernel(%arg0: i32, %arg1: memref<8x16xbf16, #tpu.memory_space<vmem>>, %arg2: memref<8x1xi32, #tpu.memory_space<vmem>>, %arg3: memref<1x128xf32, #tpu.memory_space<vmem>>, %arg4: memref<16x128xbf16, #tpu.memory_space<vmem>>, %arg5: memref<16x128xbf16, #tpu.memory_space<vmem>>, %arg6: memref<8x128xf32, #tpu.memory_space<vmem>>) attributes {dimension_semantics = [#tpu.dimension_semantics<parallel>], iteration_bounds = array<i64: 1>, scalar_prefetch = 0 : i64, scratch_operands = 0 : i64, tpu.core_type = #tpu.core_type<tc>, window_params = [{transform_indices = @transform_0, window_bounds = array<i64: 8, 16>}, {transform_indices = @transform_1, window_bounds = array<i64: 8, 1>}, {pipeline_mode = #tpu.pipeline_mode<synchronous>, transform_indices = @transform_2, window_bounds = array<i64: 1, 128>}, {pipeline_mode = #tpu.pipeline_mode<synchronous>, transform_indices = @transform_3, window_bounds = array<i64: 16, 128>}, {pipeline_mode = #tpu.pipeline_mode<synchronous>, transform_indices = @transform_4, window_bounds = array<i64: 16, 128>}, {transform_indices = @transform_5, window_bounds = array<i64: 8, 128>}]} {
    %c0 = arith.constant 0 : index
    %c0_0 = arith.constant 0 : index
    %0 = vector.load %arg1[%c0, %c0_0] : memref<8x16xbf16, #tpu.memory_space<vmem>>, vector<8x16xbf16>
    %c0_1 = arith.constant 0 : index
    %c0_2 = arith.constant 0 : index
    %1 = vector.load %arg4[%c0_1, %c0_2] : memref<16x128xbf16, #tpu.memory_space<vmem>>, vector<16x128xbf16>
    %cst = arith.constant dense<0.000000e+00> : vector<8x128xf32>
    %2 = tpu.matmul %0, %1, %cst {dimension_numbers = #tpu.dot_dimension_numbers<[1], [0], [0], [1], [0, 0, 1, 1], [], []>} : vector<8x16xbf16>, vector<16x128xbf16>, vector<8x128xf32> -> vector<8x128xf32>
    %3 = tpu.iota {dimensions = array<i32: 1>} : vector<8x16xi32>
    %c0_3 = arith.constant 0 : index
    %c0_4 = arith.constant 0 : index
    %4 = vector.load %arg2[%c0_3, %c0_4] : memref<8x1xi32, #tpu.memory_space<vmem>>, vector<8x1xi32>
    %5 = vector.broadcast %4 : vector<8x1xi32> to vector<8x16xi32>
    %6 = arith.cmpi eq, %3, %5 : vector<8x16xi32>
    %7 = arith.extui %6 : vector<8x16xi1> to vector<8x16xi32>
    %8 = arith.sitofp %7 : vector<8x16xi32> to vector<8x16xf32>
    %9 = arith.truncf %8 : vector<8x16xf32> to vector<8x16xbf16>
    %c0_5 = arith.constant 0 : index
    %c0_6 = arith.constant 0 : index
    %10 = vector.load %arg5[%c0_5, %c0_6] : memref<16x128xbf16, #tpu.memory_space<vmem>>, vector<16x128xbf16>
    %cst_7 = arith.constant dense<0.000000e+00> : vector<8x128xf32>
    %11 = tpu.matmul %9, %10, %cst_7 {dimension_numbers = #tpu.dot_dimension_numbers<[1], [0], [0], [1], [0, 0, 1, 1], [], []>} : vector<8x16xbf16>, vector<16x128xbf16>, vector<8x128xf32> -> vector<8x128xf32>
    %12 = arith.addf %2, %11 : vector<8x128xf32>
    %c0_8 = arith.constant 0 : index
    %c0_9 = arith.constant 0 : index
    %13 = vector.load %arg3[%c0_8, %c0_9] : memref<1x128xf32, #tpu.memory_space<vmem>>, vector<1x128xf32>
    %14 = vector.broadcast %13 : vector<1x128xf32> to vector<8x128xf32>
    %15 = arith.addf %12, %14 : vector<8x128xf32>
    %c0_10 = arith.constant 0 : index
    %c0_11 = arith.constant 0 : index
    %16 = vector.load %arg6[%c0_10, %c0_11] : memref<8x128xf32, #tpu.memory_space<vmem>>, vector<8x128xf32>
    tpu.vector_store %arg6[%c0_10, %c0_11], %15 {strides = array<i32>} : memref<8x128xf32, #tpu.memory_space<vmem>>, vector<8x128xf32>,
    return
  }
  func.func @transform_0(%arg0: i32) -> (i32, i32) {
    %c0_i32 = arith.constant 0 : i32
    %c0_i32_0 = arith.constant 0 : i32
    return %arg0, %c0_i32 : i32, i32
  }
  func.func @transform_1(%arg0: i32) -> (i32, i32) {
    %c0_i32 = arith.constant 0 : i32
    %c0_i32_0 = arith.constant 0 : i32
    return %arg0, %c0_i32 : i32, i32
  }
  func.func @transform_2(%arg0: i32) -> (i32, i32) {
    %c0_i32 = arith.constant 0 : i32
    %c0_i32_0 = arith.constant 0 : i32
    %c0_i32_1 = arith.constant 0 : i32
    return %c0_i32, %c0_i32_0 : i32, i32
  }
  func.func @transform_3(%arg0: i32) -> (i32, i32) {
    %c0_i32 = arith.constant 0 : i32
    %c0_i32_0 = arith.constant 0 : i32
    %c0_i32_1 = arith.constant 0 : i32
    return %c0_i32, %c0_i32_0 : i32, i32
  }
  func.func @transform_4(%arg0: i32) -> (i32, i32) {
    %c0_i32 = arith.constant 0 : i32
    %c0_i32_0 = arith.constant 0 : i32
    %c0_i32_1 = arith.constant 0 : i32
    return %c0_i32, %c0_i32_0 : i32, i32
  }
  func.func @transform_5(%arg0: i32) -> (i32, i32) {
    %c0_i32 = arith.constant 0 : i32
    %c0_i32_0 = arith.constant 0 : i32
    return %arg0, %c0_i32 : i32, i32
  }
}

</mosaic_0001>

<llo_original>
// kernel: tpu_custom_call.1
$region0: #{tpu_custom_call.1}
  #allocation0 [shape = 'u32[]', space=smem, size = 0x4, offset = 0x4, fixed_abs, tag = 'smem constant byte address 0x4 - core index']
  #allocation1 [shape = 'u32[144,128]{1,0:T(1,128)}', space=vmem, size = 0x12000, scoped, tag = 'internal scratch']
  %s0 = inlined_call_operand.hbm [shape: bf16[8,16], index: 0, kind: input, shape index: {}]
  %s1 = inlined_call_operand.vmem [shape: s32[8,1], index: 1, kind: input, shape index: {}]
  %s2 = inlined_call_operand.hbm [shape: f32[1,128], index: 2, kind: input, shape index: {}]
  %s3 = inlined_call_operand.vmem [shape: bf16[16,128], index: 3, kind: input, shape index: {}]
  %s4 = inlined_call_operand.vmem [shape: bf16[16,128], index: 4, kind: input, shape index: {}]
  %s5 = inlined_call_operand.hbm [shape: f32[8,128], index: 5, kind: output, shape index: {}]
  %s6 = sld [smem:[#allocation0]]
  $region38: #{tpu_custom_call.1} parent=0
    _
  %s8 = ssub.s32 1, %s6
  %s9 = scalar_select 0, %s8, %s6
  $region1: #{tpu_custom_call.1} parent=0
    #allocation2 [shape = 'u8[2048]{0}', space=vmem, size = 0x800, scoped, tag = 'input window, operand 0, single buffered']
    #allocation3 [shape = 's32[1]{0}', space=sflag, size = 0x4, scoped, tag = 'scoped memory for tpu_custom_call.1']
    #allocation4 [shape = 's32[1]{0}', space=sflag, size = 0x4, scoped, tag = 'scoped memory for tpu_custom_call.1']
    #allocation5 [shape = 'u8[512]{0}', space=vmem, size = 0x400, scoped, tag = 'input window, operand 2, single buffered']
    #allocation6 [shape = 's32[1]{0}', space=sflag, size = 0x4, scoped, tag = 'scoped memory for tpu_custom_call.1']
    #allocation7 [shape = 'u8[4096]{0}', space=vmem, size = 0x1000, scoped, tag = 'output window, operand 0, single buffered']
    %10 = vsyncpa [#allocation3], 0
    %11 = vsyncpa [#allocation6], 0
    %12 = vsyncpa [#allocation4], 0
    // Predicated region
    $region2: #{tpu_custom_call.1} parent=1 // pred_check
      _
    $region3: #{tpu_custom_call.1} parent=1 // pred_check_branch
      %14 = sbr.rel (0) target = $region5
    $region4: #{tpu_custom_call.1} parent=1 // pred_region
      %s16 = ssub.s32 64, 64
      %17 = vsyncadd [#allocation3], %s16
      %s19 = sshll.u32 [#allocation2], 4
      %s20 = int_to_ptr.vmem [resolvable:$true] %s19
      %22 = dma.hbm_to_vmem [thread:$0]  %s0, 64, %s20, [#allocation3]
    $region5: #{tpu_custom_call.1} parent=1 // pred_fallthru
      _
    // Predicated region
    $region6: #{tpu_custom_call.1} parent=1 // pred_check
      _
    $region7: #{tpu_custom_call.1} parent=1 // pred_check_branch
      %24 = sbr.rel (0) target = $region9
    $region8: #{tpu_custom_call.1} parent=1 // pred_region
      _
    $region9: #{tpu_custom_call.1} parent=1 // pred_fallthru
      _
    // Predicated region
    $region10: #{tpu_custom_call.1} parent=1 // pred_check
      _
    $region11: #{tpu_custom_call.1} parent=1 // pred_check_branch
      %26 = sbr.rel (0) target = $region13
    $region12: #{tpu_custom_call.1} parent=1 // pred_region
      %s28 = ssub.s32 16, 16
      %29 = vsyncadd [#allocation6], %s28
      %s31 = sshll.u32 [#allocation5], 4
      %s32 = int_to_ptr.vmem [resolvable:$true] %s31
      %34 = dma.hbm_to_vmem [thread:$0]  %s2, 16, %s32, [#allocation6]
    $region13: #{tpu_custom_call.1} parent=1 // pred_fallthru
      _
    // Predicated region
    $region14: #{tpu_custom_call.1} parent=1 // pred_check
      _
    $region15: #{tpu_custom_call.1} parent=1 // pred_check_branch
      %36 = sbr.rel (0) target = $region17
    $region16: #{tpu_custom_call.1} parent=1 // pred_region
      _
    $region17: #{tpu_custom_call.1} parent=1 // pred_fallthru
      _
    // Predicated region
    $region18: #{tpu_custom_call.1} parent=1 // pred_check
      _
    $region19: #{tpu_custom_call.1} parent=1 // pred_check_branch
      %38 = sbr.rel (0) target = $region21
    $region20: #{tpu_custom_call.1} parent=1 // pred_region
      _
    $region21: #{tpu_custom_call.1} parent=1 // pred_fallthru
      _
    // Predicated region
    $region22: #{tpu_custom_call.1} parent=1 // pred_check
      _
    $region23: #{tpu_custom_call.1} parent=1 // pred_check_branch
      %40 = sbr.rel (0) target = $region25
    $region24: #{tpu_custom_call.1} parent=1 // pred_region
      %41 = dma.done [#allocation3], 64
    $region25: #{tpu_custom_call.1} parent=1 // pred_fallthru
      _
    // Predicated region
    $region26: #{tpu_custom_call.1} parent=1 // pred_check
      _
    $region27: #{tpu_custom_call.1} parent=1 // pred_check_branch
      %43 = sbr.rel (0) target = $region29
    $region28: #{tpu_custom_call.1} parent=1 // pred_region
      %44 = dma.done [#allocation6], 16
    $region29: #{tpu_custom_call.1} parent=1 // pred_fallthru
      _
    %v46 = vld [vmem:[#allocation2] sm:$0xf]
    %v47 = vld [vmem:[%s3] sm:$0xf]
    %v48 = vld [vmem:[%s3 + $0x4] sm:$0xf]
    %v49 = vlaneseq
    %v50 = vand.u32 %v49, 127
    %v51 = vld [vmem:[%s1] sm:$0xff]
    %52 = vset.pattern.permute.xlu0 0
    %53 = vperm.xlu0 %52, %v51
    %v54 = vpop.permute.xlu0 %53
    %vm55 = vcmp.eq.s32.totalorder %v50, %v54
    %v56 = vsel %vm55, 1, 0
    %v57 = vcvt.s32.f32 %v56
    %v58 = vpack.c.bf16 %v57, %v57
    %v59 = vld [vmem:[%s4] sm:$0xf]
    %v60 = vld [vmem:[%s4 + $0x4] sm:$0xf]
    %v63 = vunpack.c.l.b16 %v59
    %v64 = vunpack.c.l.b16 %v60
    %v65 = vpack.c.b16 %v64, %v63
    %vm67 = vcmask 130048
    %v69 = vsel %vm67, %v58, 0
    %71 = vmatprep.subr.bf16.mxu0 0
    %72 = vmatpush1.bf16.msra.mxu0 %v65
    %73 = vmatprep.subr.bf16.mxu0 0
    %74 = vmatpush1.bf16.msra.mxu0 0
    %75 = vmatprep.subr.bf16.mxu0 0
    %76 = vmatpush1.bf16.msra.mxu0 0
    %77 = vmatprep.subr.bf16.mxu0 0
    %78 = vmatpush1.bf16.msra.mxu0 0
    %79 = vmatprep.subr.bf16.mxu0 0
    %80 = vmatpush1.bf16.msra.mxu0 0
    %81 = vmatprep.subr.bf16.mxu0 0
    %82 = vmatpush1.bf16.msra.mxu0 0
    %83 = vmatprep.subr.bf16.mxu0 0
    %84 = vmatpush1.bf16.msra.mxu0 0
    %85 = vmatprep.subr.bf16.mxu0 0
    %86 = vmatpush1.bf16.msra.mxu0 0
    %87 = vmatprep.subr.bf16.mxu0 0
    %88 = vmatpush1.bf16.msra.mxu0 0
    %89 = vmatprep.subr.bf16.mxu0 0
    %90 = vmatpush1.bf16.msra.mxu0 0
    %91 = vmatprep.subr.bf16.mxu0 0
    %92 = vmatpush1.bf16.msra.mxu0 0
    %93 = vmatprep.subr.bf16.mxu0 0
    %94 = vmatpush1.bf16.msra.mxu0 0
    %95 = vmatprep.subr.bf16.mxu0 0
    %96 = vmatpush1.bf16.msra.mxu0 0
    %97 = vmatprep.subr.bf16.mxu0 0
    %98 = vmatpush1.bf16.msra.mxu0 0
    %99 = vmatprep.subr.bf16.mxu0 0
    %100 = vmatpush1.bf16.msra.mxu0 0
    %101 = vmatprep.subr.bf16.mxu0 0
    %102 = vmatpush1.bf16.msra.mxu0 0
    %103 = vmatprep.mubr.bf16.mxu0 0
    %104 = vmatmul.mubr.bf16.gmra.mrb[0].mxu0 %v69
    %v105 = vpop.f32.mrb[0].mxu0
    %v106 = vadd.f32 0.0, %v105
    %v107 = vpop.f32.mrb[0].mxu0
    %v108 = vpop.f32.mrb[0].mxu0
    %v109 = vpop.f32.mrb[0].mxu0
    %110 = vdwg.mxu0
    %v113 = vunpack.c.l.b16 %v47
    %v114 = vunpack.c.l.b16 %v48
    %v115 = vpack.c.b16 %v114, %v113
    %v118 = vsel %vm67, %v46, 0
    %120 = vmatprep.subr.bf16.mxu0 0
    %121 = vmatpush1.bf16.msra.mxu0 %v115
    %122 = vmatprep.subr.bf16.mxu0 0
    %123 = vmatpush1.bf16.msra.mxu0 0
    %124 = vmatprep.subr.bf16.mxu0 0
    %125 = vmatpush1.bf16.msra.mxu0 0
    %126 = vmatprep.subr.bf16.mxu0 0
    %127 = vmatpush1.bf16.msra.mxu0 0
    %128 = vmatprep.subr.bf16.mxu0 0
    %129 = vmatpush1.bf16.msra.mxu0 0
    %130 = vmatprep.subr.bf16.mxu0 0
    %131 = vmatpush1.bf16.msra.mxu0 0
    %132 = vmatprep.subr.bf16.mxu0 0
    %133 = vmatpush1.bf16.msra.mxu0 0
    %134 = vmatprep.subr.bf16.mxu0 0
    %135 = vmatpush1.bf16.msra.mxu0 0
    %136 = vmatprep.subr.bf16.mxu0 0
    %137 = vmatpush1.bf16.msra.mxu0 0
    %138 = vmatprep.subr.bf16.mxu0 0
    %139 = vmatpush1.bf16.msra.mxu0 0
    %140 = vmatprep.subr.bf16.mxu0 0
    %141 = vmatpush1.bf16.msra.mxu0 0
    %142 = vmatprep.subr.bf16.mxu0 0
    %143 = vmatpush1.bf16.msra.mxu0 0
    %144 = vmatprep.subr.bf16.mxu0 0
    %145 = vmatpush1.bf16.msra.mxu0 0
    %146 = vmatprep.subr.bf16.mxu0 0
    %147 = vmatpush1.bf16.msra.mxu0 0
    %148 = vmatprep.subr.bf16.mxu0 0
    %149 = vmatpush1.bf16.msra.mxu0 0
    %150 = vmatprep.subr.bf16.mxu0 0
    %151 = vmatpush1.bf16.msra.mxu0 0
    %152 = vmatprep.mubr.bf16.mxu0 0
    %153 = vmatmul.mubr.bf16.gmra.mrb[0].mxu0 %v118
    %v154 = vpop.f32.mrb[0].mxu0
    %v155 = vadd.f32 %v106, %v154
    %v156 = vpop.f32.mrb[0].mxu0
    %v157 = vpop.f32.mrb[0].mxu0
    %v158 = vpop.f32.mrb[0].mxu0
    %159 = vdwg.mxu0
    %v160 = vld [vmem:[#allocation5] sm:$0x1]
    %v162 = vlaneseq
    %v163 = vshrl.u32 %v162, 7
    %v164 = vsub.s32 0, %v163
    %v165 = vrot.slane %v160, %v164
    %v167 = vadd.f32 %v155, %v165
    %168 = vst [vmem:[#allocation7] sm:$0xff] %v167
    // Predicated region
    $region30: #{tpu_custom_call.1} parent=1 // pred_check
      _
    $region31: #{tpu_custom_call.1} parent=1 // pred_check_branch
      %170 = sbr.rel (0) target = $region33
    $region32: #{tpu_custom_call.1} parent=1 // pred_region
      %s172 = ssub.s32 128, 128
      %173 = vsyncadd [#allocation4], %s172
      %s175 = sshll.u32 [#allocation7], 4
      %s176 = int_to_ptr.vmem [resolvable:$true] %s175
      %178 = dma.vmem_to_hbm [thread:$0]  %s176, 128, %s5, [#allocation4]
    $region33: #{tpu_custom_call.1} parent=1 // pred_fallthru
      _
    // Predicated region
    $region34: #{tpu_custom_call.1} parent=1 // pred_check
      _
    $region35: #{tpu_custom_call.1} parent=1 // pred_check_branch
      %180 = sbr.rel (0) target = $region37
    $region36: #{tpu_custom_call.1} parent=1 // pred_region
      %181 = dma.done [#allocation4], 128
    $region37: #{tpu_custom_call.1} parent=1 // pred_fallthru
      _
    %182 = vsyncpa [#allocation3], 1
    %183 = vsyncpa [#allocation6], 1
    %184 = vsyncpa [#allocation4], 1

</llo_original>
